<compile_context>
chip_gen: v5e
topology: v5e:2x2
jax: 0.10.0
libtpu: 0.0.40
codegen_flags: <defaults>
</compile_context>

<pallas_src>
import functools

import jax
import jax.numpy as jnp
from jax import lax
from jax.experimental import pallas as pl
from jax.experimental.pallas import tpu as pltpu


def _round_up(x, m):
    return ((x + m - 1) // m) * m


def _pick_row_tile(n):
    # Largest "nice" row tile that evenly divides N; fall back to full-array
    # blocks (always legal) for small / odd N.
    for t in (256, 128):
        if n > t and n % t == 0:
            return t
    return n


def _fused_gin_kernel(adj_ref, x_ref, w1_ref, b1_ref, w2_ref, b2_ref,
                      o_ref, z_ref, *, eps, n_classes, row_tile):
    """One grid step of the fused 2-layer GIN.

    grid = (phase, row_tile_index):
      phase 0: z[rows] = relu((x[rows] + A[rows,:]@x) @ W1 + b1) @ W2
      phase 1: o[rows] = log_softmax(z[rows] + A[rows,:]@z + b2)
    """
    phase = pl.program_id(0)
    i = pl.program_id(1)
    r0 = pl.multiple_of(i * row_tile, row_tile)
    a = adj_ref[...].astype(jnp.float32)            # (tm, N), exact 0/1

    @pl.when(phase == 0)
    def _layer1():
        x_all = x_ref[...]                          # (N, F), resident
        x_rows = x_ref[pl.ds(r0, row_tile), :]      # (tm, F)
        # GIN aggregation (original order: inner dim F is the narrow one here).
        agg = jnp.dot(a, x_all, preferred_element_type=jnp.float32)
        if eps == 0.0:                              # static: skip the multiply
            agg = agg + x_rows
        else:
            agg = agg + (1.0 + eps) * x_rows
        h = jnp.dot(agg, w1_ref[...], preferred_element_type=jnp.float32)
        h = jnp.maximum(h + b1_ref[...], 0.0)       # relu
        # TODO(synk): training-mode dropout would use pltpu.prng_seed /
        # pltpu.prng_random_bits here; inference dropout is the identity.
        # Algebraic reorder: pre-apply W2 so layer 2's NxN matmul runs against
        # the narrow z matrix:  (h + A@h)@W2 == h@W2 + A@(h@W2).
        z_ref[pl.ds(r0, row_tile), :] = jnp.dot(
            h, w2_ref[...], preferred_element_type=jnp.float32)

    @pl.when(phase == 1)
    def _layer2():
        z_all = z_ref[...]                          # (N, Cp)
        z_rows = z_ref[pl.ds(r0, row_tile), :]      # (tm, Cp)
        logits = jnp.dot(a, z_all, preferred_element_type=jnp.float32)
        if eps == 0.0:
            logits = logits + z_rows
        else:
            logits = logits + (1.0 + eps) * z_rows
        logits = logits + b2_ref[...]
        # Mask the zero-padded class columns before the (stable) log_softmax.
        col = lax.broadcasted_iota(jnp.int32, logits.shape, 1)
        logits = jnp.where(col < n_classes, logits, -1e30)
        m = jnp.max(logits, axis=-1, keepdims=True)
        s = logits - m
        lse = jnp.log(jnp.sum(jnp.exp(s), axis=-1, keepdims=True))
        o_ref[...] = (s - lse).astype(o_ref.dtype)


@functools.partial(jax.jit, static_argnames=("training",))
def gin_forward(params, features, edges, training=False):
    """Full GIN forward (GIN1 -> relu -> dropout -> GIN2 -> log_softmax)."""
    del training  # inference-mode dropout is the identity
    n, f = features.shape
    hidden = params["w1"].shape[1]
    classes = params["w2"].shape[1]
    hp = _round_up(hidden, 128)     # lane-dense hidden width
    cp = _round_up(classes, 128)    # lane-dense class width

    # Zero-pad weights/biases to lane-dense widths (harmless: padded hidden
    # columns stay exactly 0 through relu and contribute nothing to h @ W2).
    w1p = jnp.zeros((f, hp), jnp.float32).at[:, :hidden].set(
        params["w1"].astype(jnp.float32))
    b1p = jnp.zeros((1, hp), jnp.float32).at[:, :hidden].set(
        params["b1"].astype(jnp.float32))
    w2p = jnp.zeros((hp, cp), jnp.float32).at[:hidden, :classes].set(
        params["w2"].astype(jnp.float32))
    b2p = jnp.zeros((1, cp), jnp.float32).at[:, :classes].set(
        params["b2"].astype(jnp.float32))

    adj = edges.astype(jnp.bfloat16)       # 0/1 adjacency: bf16 is lossless
    x = features.astype(jnp.float32)

    tm = _pick_row_tile(n)
    n_tiles = n // tm
    grid = (2, n_tiles)                    # (phase, row tile)

    kernel = functools.partial(
        _fused_gin_kernel, eps=0.0, n_classes=classes, row_tile=tm)

    out_padded = pl.pallas_call(
        kernel,
        out_shape=jax.ShapeDtypeStruct((n, cp), jnp.float32),
        grid=grid,
        in_specs=[
            # Streamed (double-buffered) adjacency row slab.
            pl.BlockSpec((tm, n), lambda p, i: (i, 0)),
            # Small operands: full blocks, fetched once and kept resident.
            pl.BlockSpec((n, f), lambda p, i: (0, 0)),
            pl.BlockSpec((f, hp), lambda p, i: (0, 0)),
            pl.BlockSpec((1, hp), lambda p, i: (0, 0)),
            pl.BlockSpec((hp, cp), lambda p, i: (0, 0)),
            pl.BlockSpec((1, cp), lambda p, i: (0, 0)),
        ],
        # Phase 0 never writes the output; pinning its block index to 0 during
        # phase 0 (i * p == 0) means an unwritten block is never flushed.
        out_specs=pl.BlockSpec((tm, cp), lambda p, i: (i * p, 0)),
        scratch_shapes=[
            pltpu.VMEM((n, cp), jnp.float32),   # z = h1 @ W2, lives across grid
        ],
        compiler_params=pltpu.CompilerParams(
            # Phase 1 consumes the full z scratch written by phase 0, so both
            # grid axes must run sequentially on one core.
            dimension_semantics=("arbitrary", "arbitrary"),
            vmem_limit_bytes=48 * 1024 * 1024,
        ),
    )(adj, x, w1p, b1p, w2p, b2p)

    return out_padded[:, :classes]


def init_params(key, feature, hidden, classes):
    k1, k2, k3, k4 = jax.random.split(key, 4)
    return {
        "w1": jax.random.normal(k1, (feature, hidden), jnp.float32) * 0.1,
        "b1": jax.random.normal(k2, (hidden,), jnp.float32) * 0.01,
        "w2": jax.random.normal(k3, (hidden, classes), jnp.float32) * 0.1,
        "b2": jax.random.normal(k4, (classes,), jnp.float32) * 0.01,
    }


def _reference_forward(params, features, edges):
    """Pure-JAX reference with the original (unreordered) compute order."""
    a = edges.astype(jnp.float32)
    x = features.astype(jnp.float32)
    h1 = jax.nn.relu((x + a @ x) @ params["w1"] + params["b1"])
    logits = (h1 + a @ h1) @ params["w2"] + params["b2"]
    return jax.nn.log_softmax(logits, axis=1)


if __name__ == "__main__":
    key = jax.random.PRNGKey(0)
    k_feat, k_adj, k_param = jax.random.split(key, 3)

    N, FEATURE, HIDDEN, CLASSES = 32, 16, 32, 8

    features = jax.random.normal(k_feat, (N, FEATURE), jnp.float32)
    # Dense symmetric 0/1 adjacency, self loops removed (the (1+eps)*x term
    # carries the self contribution).  Stored as bf16 — exact for 0/1 values.
    a = (jax.random.uniform(k_adj, (N, N)) < 0.2).astype(jnp.float32)
    edges = (jnp.clip(a + a.T, 0.0, 1.0)
             * (1.0 - jnp.eye(N, dtype=jnp.float32))).astype(jnp.bfloat16)

    params = init_params(k_param, FEATURE, HIDDEN, CLASSES)

    out = gin_forward(params, features, edges, training=False)
    out = jax.block_until_ready(out)

    assert out.shape == (N, CLASSES)
    # rows of log_softmax must sum (in prob space) to ~1
    assert jnp.allclose(jnp.sum(jnp.exp(out), axis=1), 1.0, atol=1e-4)
    # match the unfused pure-JAX reference (layer-2 algebraic reorder only
    # changes f32 rounding order)
    ref = _reference_forward(params, features, edges)
    assert jnp.allclose(out, ref, atol=1e-3, rtol=1e-3)
    print("KERNEL_OK")
</pallas_src>

<mosaic_0001>
module attributes {stable_mosaic.version = 11 : i64} {
  func.func @_fused_gin_kernel(%arg0: i32, %arg1: i32, %arg2: memref<32x32xbf16, #tpu.memory_space<vmem>>, %arg3: memref<32x16xf32, #tpu.memory_space<vmem>>, %arg4: memref<16x128xf32, #tpu.memory_space<vmem>>, %arg5: memref<1x128xf32, #tpu.memory_space<vmem>>, %arg6: memref<128x128xf32, #tpu.memory_space<vmem>>, %arg7: memref<1x128xf32, #tpu.memory_space<vmem>>, %arg8: memref<32x128xf32, #tpu.memory_space<vmem>>, %arg9: memref<32x128xf32, #tpu.memory_space<vmem>>) attributes {dimension_semantics = [#tpu.dimension_semantics<arbitrary>, #tpu.dimension_semantics<arbitrary>], iteration_bounds = array<i64: 2, 1>, scalar_prefetch = 0 : i64, scratch_operands = 1 : i64, tpu.core_type = #tpu.core_type<tc>, window_params = [{transform_indices = @transform_0, window_bounds = array<i64: 32, 32>}, {pipeline_mode = #tpu.pipeline_mode<synchronous>, transform_indices = @transform_1, window_bounds = array<i64: 32, 16>}, {pipeline_mode = #tpu.pipeline_mode<synchronous>, transform_indices = @transform_2, window_bounds = array<i64: 16, 128>}, {pipeline_mode = #tpu.pipeline_mode<synchronous>, transform_indices = @transform_3, window_bounds = array<i64: 1, 128>}, {pipeline_mode = #tpu.pipeline_mode<synchronous>, transform_indices = @transform_4, window_bounds = array<i64: 128, 128>}, {pipeline_mode = #tpu.pipeline_mode<synchronous>, transform_indices = @transform_5, window_bounds = array<i64: 1, 128>}, {transform_indices = @transform_6, window_bounds = array<i64: 32, 128>}]} {
    %c32_i32 = arith.constant 32 : i32
    %0 = arith.muli %arg1, %c32_i32 : i32
    %1 = tpu.assume_multiple %0, 32 : i32
    %c0 = arith.constant 0 : index
    %c0_0 = arith.constant 0 : index
    %2 = vector.load %arg2[%c0, %c0_0] : memref<32x32xbf16, #tpu.memory_space<vmem>>, vector<32x32xbf16>
    %3 = arith.extf %2 : vector<32x32xbf16> to vector<32x32xf32>
    %c0_i32 = arith.constant 0 : i32
    %4 = arith.cmpi eq, %arg0, %c0_i32 : i32
    %5 = arith.extui %4 : i1 to i32
    %c0_i32_1 = arith.constant 0 : i32
    %6 = arith.cmpi ne, %5, %c0_i32_1 : i32
    scf.if %6 {
      %c0_3 = arith.constant 0 : index
      %c0_4 = arith.constant 0 : index
      %10 = vector.load %arg3[%c0_3, %c0_4] : memref<32x16xf32, #tpu.memory_space<vmem>>, vector<32x16xf32>
      %11 = arith.index_cast %1 : i32 to index
      %c0_5 = arith.constant 0 : index
      %12 = vector.load %arg3[%11, %c0_5] : memref<32x16xf32, #tpu.memory_space<vmem>>, vector<32x16xf32>
      %cst = arith.constant dense<0.000000e+00> : vector<32x16xf32>
      %13 = tpu.matmul %3, %10, %cst {dimension_numbers = #tpu.dot_dimension_numbers<[1], [0], [0], [1], [0, 0, 1, 1], [], []>} : vector<32x32xf32>, vector<32x16xf32>, vector<32x16xf32> -> vector<32x16xf32>
      %14 = arith.addf %13, %12 : vector<32x16xf32>
      %c0_6 = arith.constant 0 : index
      %c0_7 = arith.constant 0 : index
      %15 = vector.load %arg4[%c0_6, %c0_7] : memref<16x128xf32, #tpu.memory_space<vmem>>, vector<16x128xf32>
      %cst_8 = arith.constant dense<0.000000e+00> : vector<32x128xf32>
      %16 = tpu.matmul %14, %15, %cst_8 {dimension_numbers = #tpu.dot_dimension_numbers<[1], [0], [0], [1], [0, 0, 1, 1], [], []>} : vector<32x16xf32>, vector<16x128xf32>, vector<32x128xf32> -> vector<32x128xf32>
      %c0_9 = arith.constant 0 : index
      %c0_10 = arith.constant 0 : index
      %17 = vector.load %arg5[%c0_9, %c0_10] : memref<1x128xf32, #tpu.memory_space<vmem>>, vector<1x128xf32>
      %18 = vector.broadcast %17 : vector<1x128xf32> to vector<32x128xf32>
      %19 = arith.addf %16, %18 : vector<32x128xf32>
      %cst_11 = arith.constant 0.000000e+00 : f32
      %20 = vector.broadcast %cst_11 : f32 to vector<32x128xf32>
      %21 = arith.maximumf %19, %20 : vector<32x128xf32>
      %c0_12 = arith.constant 0 : index
      %c0_13 = arith.constant 0 : index
      %22 = vector.load %arg6[%c0_12, %c0_13] : memref<128x128xf32, #tpu.memory_space<vmem>>, vector<128x128xf32>
      %cst_14 = arith.constant dense<0.000000e+00> : vector<32x128xf32>
      %23 = tpu.matmul %21, %22, %cst_14 {dimension_numbers = #tpu.dot_dimension_numbers<[1], [0], [0], [1], [0, 0, 1, 1], [], []>} : vector<32x128xf32>, vector<128x128xf32>, vector<32x128xf32> -> vector<32x128xf32>
      %24 = arith.index_cast %1 : i32 to index
      %c0_15 = arith.constant 0 : index
      %25 = vector.load %arg9[%24, %c0_15] : memref<32x128xf32, #tpu.memory_space<vmem>>, vector<32x128xf32>
      tpu.vector_store %arg9[%24, %c0_15], %23 {strides = array<i32>} : memref<32x128xf32, #tpu.memory_space<vmem>>, vector<32x128xf32>,
    } else {
    }
    %c1_i32 = arith.constant 1 : i32
    %7 = arith.cmpi eq, %arg0, %c1_i32 : i32
    %8 = arith.extui %7 : i1 to i32
    %c0_i32_2 = arith.constant 0 : i32
    %9 = arith.cmpi ne, %8, %c0_i32_2 : i32
    scf.if %9 {
      %c0_3 = arith.constant 0 : index
      %c0_4 = arith.constant 0 : index
      %10 = vector.load %arg9[%c0_3, %c0_4] : memref<32x128xf32, #tpu.memory_space<vmem>>, vector<32x128xf32>
      %11 = arith.index_cast %1 : i32 to index
      %c0_5 = arith.constant 0 : index
      %12 = vector.load %arg9[%11, %c0_5] : memref<32x128xf32, #tpu.memory_space<vmem>>, vector<32x128xf32>
      %cst = arith.constant dense<0.000000e+00> : vector<32x128xf32>
      %13 = tpu.matmul %3, %10, %cst {dimension_numbers = #tpu.dot_dimension_numbers<[1], [0], [0], [1], [0, 0, 1, 1], [], []>} : vector<32x32xf32>, vector<32x128xf32>, vector<32x128xf32> -> vector<32x128xf32>
      %14 = arith.addf %13, %12 : vector<32x128xf32>
      %c0_6 = arith.constant 0 : index
      %c0_7 = arith.constant 0 : index
      %15 = vector.load %arg7[%c0_6, %c0_7] : memref<1x128xf32, #tpu.memory_space<vmem>>, vector<1x128xf32>
      %16 = vector.broadcast %15 : vector<1x128xf32> to vector<32x128xf32>
      %17 = arith.addf %14, %16 : vector<32x128xf32>
      %18 = tpu.iota {dimensions = array<i32: 1>} : vector<32x128xi32>
      %c8_i32 = arith.constant 8 : i32
      %19 = vector.broadcast %c8_i32 : i32 to vector<32x128xi32>
      %20 = arith.cmpi slt, %18, %19 : vector<32x128xi32>
      %cst_8 = arith.constant -1.000000e+30 : f32
      %21 = vector.broadcast %cst_8 : f32 to vector<32x128xf32>
      %22 = arith.select %20, %17, %21 : vector<32x128xi1>, vector<32x128xf32>
      %cst_9 = arith.constant dense<0xFF800000> : vector<32xf32>
      %23 = vector.multi_reduction <maximumf>, %22, %cst_9 [1] : vector<32x128xf32> to vector<32xf32>
      %24 = vector.shape_cast %23 : vector<32xf32> to vector<32x1xf32>
      %25 = vector.broadcast %24 : vector<32x1xf32> to vector<32x128xf32>
      %26 = arith.subf %22, %25 : vector<32x128xf32>
      %27 = math.exp %26 : vector<32x128xf32>
      %cst_10 = arith.constant dense<0.000000e+00> : vector<32xf32>
      %28 = vector.multi_reduction <add>, %27, %cst_10 [1] : vector<32x128xf32> to vector<32xf32>
      %29 = vector.shape_cast %28 : vector<32xf32> to vector<32x1xf32>
      %30 = math.log %29 : vector<32x1xf32>
      %31 = vector.broadcast %30 : vector<32x1xf32> to vector<32x128xf32>
      %32 = arith.subf %26, %31 : vector<32x128xf32>
      %c0_11 = arith.constant 0 : index
      %c0_12 = arith.constant 0 : index
      %33 = vector.load %arg8[%c0_11, %c0_12] : memref<32x128xf32, #tpu.memory_space<vmem>>, vector<32x128xf32>
      tpu.vector_store %arg8[%c0_11, %c0_12], %32 {strides = array<i32>} : memref<32x128xf32, #tpu.memory_space<vmem>>, vector<32x128xf32>,
    } else {
    }
    return
  }
  func.func @transform_0(%arg0: i32, %arg1: i32) -> (i32, i32) {
    %c0_i32 = arith.constant 0 : i32
    %c0_i32_0 = arith.constant 0 : i32
    return %arg1, %c0_i32 : i32, i32
  }
  func.func @transform_1(%arg0: i32, %arg1: i32) -> (i32, i32) {
    %c0_i32 = arith.constant 0 : i32
    %c0_i32_0 = arith.constant 0 : i32
    %c0_i32_1 = arith.constant 0 : i32
    return %c0_i32, %c0_i32_0 : i32, i32
  }
  func.func @transform_2(%arg0: i32, %arg1: i32) -> (i32, i32) {
    %c0_i32 = arith.constant 0 : i32
    %c0_i32_0 = arith.constant 0 : i32
    %c0_i32_1 = arith.constant 0 : i32
    return %c0_i32, %c0_i32_0 : i32, i32
  }
  func.func @transform_3(%arg0: i32, %arg1: i32) -> (i32, i32) {
    %c0_i32 = arith.constant 0 : i32
    %c0_i32_0 = arith.constant 0 : i32
    %c0_i32_1 = arith.constant 0 : i32
    return %c0_i32, %c0_i32_0 : i32, i32
  }
  func.func @transform_4(%arg0: i32, %arg1: i32) -> (i32, i32) {
    %c0_i32 = arith.constant 0 : i32
    %c0_i32_0 = arith.constant 0 : i32
    %c0_i32_1 = arith.constant 0 : i32
    return %c0_i32, %c0_i32_0 : i32, i32
  }
  func.func @transform_5(%arg0: i32, %arg1: i32) -> (i32, i32) {
    %c0_i32 = arith.constant 0 : i32
    %c0_i32_0 = arith.constant 0 : i32
    %c0_i32_1 = arith.constant 0 : i32
    return %c0_i32, %c0_i32_0 : i32, i32
  }
  func.func @transform_6(%arg0: i32, %arg1: i32) -> (i32, i32) {
    %0 = arith.muli %arg1, %arg0 : i32
    %c0_i32 = arith.constant 0 : i32
    %c0_i32_0 = arith.constant 0 : i32
    return %0, %c0_i32 : i32, i32
  }
}

</mosaic_0001>

<llo_original>
// kernel: gin_forward.1
$region0: #{gin_forward.1}
  #allocation0 [shape = 'u32[]', space=smem, size = 0x4, offset = 0x4, fixed_abs, tag = 'smem constant byte address 0x4 - core index']
  #allocation1 [shape = 'u32[72,128]{1,0:T(1,128)}', space=vmem, size = 0x9000, scoped, tag = 'internal scratch']
  #allocation2 [shape = 'f32[32,128]{1,0:T(8,128)}', space=vmem, size = 0x4000, scoped, tag = 'scratch operand']
  %s0 = inlined_call_operand.vmem [shape: bf16[32,32], index: 0, kind: input, shape index: {}]
  %s1 = inlined_call_operand.vmem [shape: f32[32,16], index: 1, kind: input, shape index: {}]
  %s2 = inlined_call_operand.vmem [shape: f32[16,128], index: 2, kind: input, shape index: {}]
  %s3 = inlined_call_operand.vmem [shape: f32[1,128], index: 3, kind: input, shape index: {}]
  %s4 = inlined_call_operand.vmem [shape: f32[128,128], index: 4, kind: input, shape index: {}]
  %s5 = inlined_call_operand.vmem [shape: f32[1,128], index: 5, kind: input, shape index: {}]
  %s6 = inlined_call_operand.vmem [shape: f32[32,128], index: 6, kind: output, shape index: {}]
  %s7 = sld [smem:[#allocation0]]
  $region65: #{gin_forward.1} parent=0
    _
  %s9 = ssub.s32 1, %s7
  %s10 = scalar_select 0, %s9, %s7
  loop: start=0, step=1, limit=4
  $region2: #{gin_forward.1} parent=0 // loop_pre_header
    _
  $region3: #{gin_forward.1} parent=0 // loop_header
    %s12 = sphi 0, %s16
    %p13 = scmp.ge.s32.totalorder %s12, 4
    %s19 = sphi 0, %s31
    %s20 = sphi 0, %s27
    %s21 = sphi 0, %s19
    %s22 = sphi 0, %s20
    %s23 = sphi 0, %s21
    %s24 = sphi 0, %s22
    %s34 = sphi 0, %s36
    %s37 = sphi 0, %s34
    %s38 = sphi 0, %s37
    %s54 = sphi 0, %s38
    %s58 = sphi 0, %s58
    %s60 = sphi 0, %s58
    %s61 = sphi 0, %s60
    %s75 = sphi 0, %s61
    %s79 = sphi 0, %s79
    %s81 = sphi 0, %s79
    %s82 = sphi 0, %s81
    %s96 = sphi 0, %s82
    %s100 = sphi 0, %s100
    %s102 = sphi 0, %s100
    %s103 = sphi 0, %s102
    %s117 = sphi 0, %s103
    %s121 = sphi 0, %s121
    %s123 = sphi 0, %s121
    %s124 = sphi 0, %s123
    %s138 = sphi 0, %s124
    %s142 = sphi 0, %s142
    %s144 = sphi 0, %s142
    %s145 = sphi 0, %s144
    %s159 = sphi 0, %s145
    %s167 = sphi 0, %s169
    %s170 = sphi 0, %s167
    %s171 = sphi 0, %s170
    %s187 = sphi 0, %s171
  $region4: #{gin_forward.1} parent=0 // loop_header_branch
    %15 = sbr.rel (%p13) target = $region8
  $region5: #{gin_forward.1} parent=0 // loop_body
    %s17 = ssub.s32 %s12, 1
    %s18 = ssub.s32 %s12, 2
    %s25 = sadd.s32 1, %s20
    %p26 = scmp.ge.s32.totalorder %s25, 1
    %s27 = scalar_select %p26, 0, %s25
    %s28 = sadd.s32 1, %s19
    %s29 = scalar_select %p26, %s28, %s19
    %p30 = scmp.ge.s32.totalorder %s29, 2
    %s31 = scalar_select %p30, 0, %s29
    %s32 = ssub.s32 %s20, %s27
    %p33 = scmp.eq.s32.totalorder %s32, 0
    %s35 = sadd.s32 %s34, 1
    %s36 = scalar_select %p33, %s34, %s35
    %p39 = pneg %p33
    %p40 = scmp.eq.s32.totalorder %s12, 1
    %p41 = por %p39, %p40
    %p42 = scmp.ne.s32.totalorder %s34, %s37
    %p43 = scmp.eq.s32.totalorder %s12, 0
    %p44 = por %p42, %p43
    %p45 = scmp.ne.s32.totalorder %s34, %s37
    %p46 = scmp.eq.s32.totalorder %s17, 1
    %p47 = por %p45, %p46
    %p48 = scmp.ne.s32.totalorder %s37, %s38
    %p49 = scmp.eq.s32.totalorder %s17, 0
    %p50 = por %p48, %p49
    %p51 = scmp.ne.s32.totalorder %s37, %s38
    %p52 = scmp.eq.s32.totalorder %s18, 1
    %p53 = por %p51, %p52
    %p55 = scmp.ne.s32.totalorder %s38, %s54
    %p56 = scmp.eq.s32.totalorder %s18, 0
    %p57 = por %p55, %p56
    %s59 = sadd.s32 %s58, 1
    %p62 = scmp.eq.s32.totalorder %s12, 1
    %p63 = scmp.ne.s32.totalorder %s58, %s60
    %p64 = scmp.eq.s32.totalorder %s12, 0
    %p65 = por %p63, %p64
    %p66 = scmp.ne.s32.totalorder %s58, %s60
    %p67 = scmp.eq.s32.totalorder %s17, 1
    %p68 = por %p66, %p67
    %p69 = scmp.ne.s32.totalorder %s60, %s61
    %p70 = scmp.eq.s32.totalorder %s17, 0
    %p71 = por %p69, %p70
    %p72 = scmp.ne.s32.totalorder %s60, %s61
    %p73 = scmp.eq.s32.totalorder %s18, 1
    %p74 = por %p72, %p73
    %p76 = scmp.ne.s32.totalorder %s61, %s75
    %p77 = scmp.eq.s32.totalorder %s18, 0
    %p78 = por %p76, %p77
    %s80 = sadd.s32 %s79, 1
    %p83 = scmp.eq.s32.totalorder %s12, 1
    %p84 = scmp.ne.s32.totalorder %s79, %s81
    %p85 = scmp.eq.s32.totalorder %s12, 0
    %p86 = por %p84, %p85
    %p87 = scmp.ne.s32.totalorder %s79, %s81
    %p88 = scmp.eq.s32.totalorder %s17, 1
    %p89 = por %p87, %p88
    %p90 = scmp.ne.s32.totalorder %s81, %s82
    %p91 = scmp.eq.s32.totalorder %s17, 0
    %p92 = por %p90, %p91
    %p93 = scmp.ne.s32.totalorder %s81, %s82
    %p94 = scmp.eq.s32.totalorder %s18, 1
    %p95 = por %p93, %p94
    %p97 = scmp.ne.s32.totalorder %s82, %s96
    %p98 = scmp.eq.s32.totalorder %s18, 0
    %p99 = por %p97, %p98
    %s101 = sadd.s32 %s100, 1
    %p104 = scmp.eq.s32.totalorder %s12, 1
    %p105 = scmp.ne.s32.totalorder %s100, %s102
    %p106 = scmp.eq.s32.totalorder %s12, 0
    %p107 = por %p105, %p106
    %p108 = scmp.ne.s32.totalorder %s100, %s102
    %p109 = scmp.eq.s32.totalorder %s17, 1
    %p110 = por %p108, %p109
    %p111 = scmp.ne.s32.totalorder %s102, %s103
    %p112 = scmp.eq.s32.totalorder %s17, 0
    %p113 = por %p111, %p112
    %p114 = scmp.ne.s32.totalorder %s102, %s103
    %p115 = scmp.eq.s32.totalorder %s18, 1
    %p116 = por %p114, %p115
    %p118 = scmp.ne.s32.totalorder %s103, %s117
    %p119 = scmp.eq.s32.totalorder %s18, 0
    %p120 = por %p118, %p119
    %s122 = sadd.s32 %s121, 1
    %p125 = scmp.eq.s32.totalorder %s12, 1
    %p126 = scmp.ne.s32.totalorder %s121, %s123
    %p127 = scmp.eq.s32.totalorder %s12, 0
    %p128 = por %p126, %p127
    %p129 = scmp.ne.s32.totalorder %s121, %s123
    %p130 = scmp.eq.s32.totalorder %s17, 1
    %p131 = por %p129, %p130
    %p132 = scmp.ne.s32.totalorder %s123, %s124
    %p133 = scmp.eq.s32.totalorder %s17, 0
    %p134 = por %p132, %p133
    %p135 = scmp.ne.s32.totalorder %s123, %s124
    %p136 = scmp.eq.s32.totalorder %s18, 1
    %p137 = por %p135, %p136
    %p139 = scmp.ne.s32.totalorder %s124, %s138
    %p140 = scmp.eq.s32.totalorder %s18, 0
    %p141 = por %p139, %p140
    %s143 = sadd.s32 %s142, 1
    %p146 = scmp.eq.s32.totalorder %s12, 1
    %p147 = scmp.ne.s32.totalorder %s142, %s144
    %p148 = scmp.eq.s32.totalorder %s12, 0
    %p149 = por %p147, %p148
    %p150 = scmp.ne.s32.totalorder %s142, %s144
    %p151 = scmp.eq.s32.totalorder %s17, 1
    %p152 = por %p150, %p151
    %p153 = scmp.ne.s32.totalorder %s144, %s145
    %p154 = scmp.eq.s32.totalorder %s17, 0
    %p155 = por %p153, %p154
    %p156 = scmp.ne.s32.totalorder %s144, %s145
    %p157 = scmp.eq.s32.totalorder %s18, 1
    %p158 = por %p156, %p157
    %p160 = scmp.ne.s32.totalorder %s145, %s159
    %p161 = scmp.eq.s32.totalorder %s18, 0
    %p162 = por %p160, %p161
    %s163 = smul.u32 %s20, %s19
    %s164 = smul.u32 %s27, %s31
    %s165 = ssub.s32 %s163, %s164
    %p166 = scmp.eq.s32.totalorder %s165, 0
    %s168 = sadd.s32 %s167, 1
    %s169 = scalar_select %p166, %s167, %s168
    %p172 = pneg %p166
    %p173 = scmp.eq.s32.totalorder %s12, 1
    %p174 = por %p172, %p173
    %p175 = scmp.ne.s32.totalorder %s167, %s170
    %p176 = scmp.eq.s32.totalorder %s12, 0
    %p177 = por %p175, %p176
    %p178 = scmp.ne.s32.totalorder %s167, %s170
    %p179 = scmp.eq.s32.totalorder %s17, 1
    %p180 = por %p178, %p179
    %p181 = scmp.ne.s32.totalorder %s170, %s171
    %p182 = scmp.eq.s32.totalorder %s17, 0
    %p183 = por %p181, %p182
    %p184 = scmp.ne.s32.totalorder %s170, %s171
    %p185 = scmp.eq.s32.totalorder %s18, 1
    %p186 = por %p184, %p185
    %p188 = scmp.ne.s32.totalorder %s171, %s187
    %p189 = scmp.eq.s32.totalorder %s18, 0
    %p190 = por %p188, %p189
    %p191 = scmp.le.s32.totalorder 1, %s12
    %p192 = scmp.lt.s32.totalorder %s12, 3
    %p193 = pnand %p191, %p192
    %p194 = pneg %p193
    // Predicated region
    $region9: #{gin_forward.1} parent=5 // pred_check
      _
    $region10: #{gin_forward.1} parent=5 // pred_check_branch
      %196 = sbr.rel (%p193) target = $region12
    $region11: #{gin_forward.1} parent=5 // pred_region
      %s197 = ssub.s32 %s12, 1
      // Predicated region
      $region13: #{gin_forward.1} parent=11 // pred_check
        %p198 = pneg %p50
      $region14: #{gin_forward.1} parent=11 // pred_check_branch
        %200 = sbr.rel (%p198) target = $region16
      $region15: #{gin_forward.1} parent=11 // pred_region
        %s201 = smul.u32 4, %s22
        %p202 = scmp.lt.s32.totalorder %s201, 3
        %s203 = scalar_select %p202, %s201, 3
        %s204 = smul.addr %s203, 4
        %s205 = scalar_lea.vmem %s0, %s204
        %s206 = smul.u32 4, %s22
      $region16: #{gin_forward.1} parent=11 // pred_fallthru
        _
      // Predicated region
      $region17: #{gin_forward.1} parent=11 // pred_check
        %p207 = pneg %p71
      $region18: #{gin_forward.1} parent=11 // pred_check_branch
        %209 = sbr.rel (%p207) target = $region20
      $region19: #{gin_forward.1} parent=11 // pred_region
        _
      $region20: #{gin_forward.1} parent=11 // pred_fallthru
        _
      // Predicated region
      $region21: #{gin_forward.1} parent=11 // pred_check
        %p210 = pneg %p92
      $region22: #{gin_forward.1} parent=11 // pred_check_branch
        %212 = sbr.rel (%p210) target = $region24
      $region23: #{gin_forward.1} parent=11 // pred_region
        _
      $region24: #{gin_forward.1} parent=11 // pred_fallthru
        _
      // Predicated region
      $region25: #{gin_forward.1} parent=11 // pred_check
        %p213 = pneg %p113
      $region26: #{gin_forward.1} parent=11 // pred_check_branch
        %215 = sbr.rel (%p213) target = $region28
      $region27: #{gin_forward.1} parent=11 // pred_region
        _
      $region28: #{gin_forward.1} parent=11 // pred_fallthru
        _
      // Predicated region
      $region29: #{gin_forward.1} parent=11 // pred_check
        %p216 = pneg %p134
      $region30: #{gin_forward.1} parent=11 // pred_check_branch
        %218 = sbr.rel (%p216) target = $region32
      $region31: #{gin_forward.1} parent=11 // pred_region
        _
      $region32: #{gin_forward.1} parent=11 // pred_fallthru
        _
      // Predicated region
      $region33: #{gin_forward.1} parent=11 // pred_check
        %p219 = pneg %p155
      $region34: #{gin_forward.1} parent=11 // pred_check_branch
        %221 = sbr.rel (%p219) target = $region36
      $region35: #{gin_forward.1} parent=11 // pred_region
        _
      $region36: #{gin_forward.1} parent=11 // pred_fallthru
        _
    $region12: #{gin_forward.1} parent=5 // pred_fallthru
      _
    %p222 = scmp.lt.s32.totalorder %s12, 2
    // Predicated region
    $region37: #{gin_forward.1} parent=5 // pred_check
      %p223 = pneg %p222
    $region38: #{gin_forward.1} parent=5 // pred_check_branch
      %225 = sbr.rel (%p223) target = $region40
    $region39: #{gin_forward.1} parent=5 // pred_region
      _
    $region40: #{gin_forward.1} parent=5 // pred_fallthru
      _
    %p226 = scmp.le.s32.totalorder 1, %s12
    %p227 = scmp.lt.s32.totalorder %s12, 3
    %p228 = pnand %p226, %p227
    %p229 = pneg %p228
    // Predicated region
    $region41: #{gin_forward.1} parent=5 // pred_check
      _
    $region42: #{gin_forward.1} parent=5 // pred_check_branch
      %231 = sbr.rel (%p228) target = $region44
    $region43: #{gin_forward.1} parent=5 // pred_region
      %s232 = ssub.s32 %s12, 1
      %s233 = smul.u32 4, %s22
      %p234 = scmp.lt.s32.totalorder %s233, 3
      %s235 = scalar_select %p234, %s233, 3
      %s236 = smul.addr %s235, 4
      %s237 = scalar_lea.vmem %s0, %s236
      %p238 = pneg %p50
      %p239 = pneg %p47
      %p240 = pneg %p71
      %p241 = pneg %p68
      %p242 = pneg %p92
      %p243 = pneg %p89
      %p244 = pneg %p113
      %p245 = pneg %p110
      %p246 = pneg %p134
      %p247 = pneg %p131
      %p248 = pneg %p155
      %p249 = pneg %p152
      %p250 = pneg %p183
      %p251 = pneg %p180
      %s252 = smul.u32 %s22, %s21
      %s253 = smul.u32 4, %s252
      %p254 = scmp.lt.s32.totalorder %s253, 3
      %s255 = scalar_select %p254, %s253, 3
      %s256 = smul.addr %s255, 8
      %s257 = scalar_lea.vmem %s6, %s256
      %s258 = smul.u32 4, %s22
      %p259 = scmp.lt.s32.totalorder %s258, 3
      %s260 = scalar_select %p259, %s258, 3
      %s261 = smul.addr %s260, 4
      %s262 = scalar_lea.vmem %s0, %s261
      %s263 = smul.u32 4, %s22
      %s264 = smul.u32 %s22, %s21
      %s265 = smul.u32 4, %s264
      %p266 = scmp.lt.s32.totalorder %s265, 3
      %s267 = scalar_select %p266, %s265, 3
      %s268 = smul.addr %s267, 8
      %s269 = scalar_lea.vmem %s6, %s268
      %s270 = smul.u32 %s22, %s21
      %s271 = smul.u32 4, %s270
      %s272 = smul.u32 %s22, 32
      %v273 = vld [vmem:[%s262] sm:$0xf]
      %v274 = vld [vmem:[%s262 + $0x4] sm:$0xf]
      %v275 = vld [vmem:[%s262 + $0x8] sm:$0xf]
      %v276 = vld [vmem:[%s262 + $0xc] sm:$0xf]
      %v277 = vunpack.c.l.bf16 %v273
      %v278 = vunpack.c.l.bf16 %v274
      %v279 = vunpack.c.l.bf16 %v275
      %v280 = vunpack.c.l.bf16 %v276
      %p281 = scmp.eq.s32.totalorder %s21, 0
      // Predicated region
      $region45: #{gin_forward.1} parent=43 // pred_check
        %p282 = pneg %p281
      $region46: #{gin_forward.1} parent=43 // pred_check_branch
        %284 = sbr.rel (%p282) target = $region48
      $region47: #{gin_forward.1} parent=43 // pred_region
        %v285 = vld [vmem:[%s1] sm:$0xff]
        %v286 = vld [vmem:[%s1 + $0x8] sm:$0xff]
        %v287 = vld [vmem:[%s1 + $0x10] sm:$0xff]
        %v288 = vld [vmem:[%s1 + $0x18] sm:$0xff]
        %s289 = scalar_lea.vmem %s1, %s272
        %v290 = vld [vmem:[%s289] sm:$0xff]
        %v291 = vld [vmem:[%s289 + $0x8] sm:$0xff]
        %v292 = vld [vmem:[%s289 + $0x10] sm:$0xff]
        %v293 = vld [vmem:[%s289 + $0x18] sm:$0xff]
        %vm294 = vcmask 261120
        %v296 = vsel %vm294, %v277, 0
        %v299 = vsel %vm294, %v278, 0
        %v302 = vsel %vm294, %v279, 0
        %v305 = vsel %vm294, %v280, 0
        %307 = vmatpush.msra.mxu0 0.0
        %308 = vmatpush.msra.mxu0 0.0
        %309 = vmatpush.msra.mxu0 0.0
        %310 = vmatpush.msra.mxu0 0.0
        %311 = vmatpush.msra.mxu0 0.0
        %312 = vmatpush.msra.mxu0 0.0
        %313 = vmatpush.msra.mxu0 0.0
        %314 = vmatpush.msra.mxu0 0.0
        %315 = vmatpush.msra.mxu0 0.0
        %316 = vmatpush.msra.mxu0 0.0
        %317 = vmatpush.msra.mxu0 0.0
        %318 = vmatpush.msra.mxu0 0.0
        %319 = vmatpush.msra.mxu0 %v288
        %320 = vmatpush.msra.mxu0 %v287
        %321 = vmatpush.msra.mxu0 %v286
        %322 = vmatpush.msra.mxu0 %v285
        %323 = vmatmul.f32.gmra.mxu0 %v296
        %v324 = vpop.f32.mrf.mxu0
        %v325 = vadd.f32 %v290, %v324
        %326 = vmatmul.f32.gmra.mxu0 %v299
        %v327 = vpop.f32.mrf.mxu0
        %v328 = vadd.f32 %v291, %v327
        %329 = vmatmul.f32.gmra.mxu0 %v302
        %v330 = vpop.f32.mrf.mxu0
        %v331 = vadd.f32 %v292, %v330
        %332 = vmatmul.f32.gmra.mxu0 %v305
        %v333 = vpop.f32.mrf.mxu0
        %v334 = vadd.f32 %v293, %v333
        %335 = vdwg.mxu0
        %v336 = vld [vmem:[%s2] sm:$0xff]
        %v337 = vld [vmem:[%s2 + $0x8] sm:$0xff]
        %v338 = vld [vmem:[%s3] sm:$0x1]
        %v340 = vperm.slane %v338, 0
        %vm342 = vcmask 130048
        %v344 = vsel %vm342, %v325, 0
        %v347 = vsel %vm342, %v328, 0
        %v350 = vsel %vm342, %v331, 0
        %v353 = vsel %vm342, %v334, 0
        %355 = vmatpush.msra.mxu0 0.0
        %356 = vmatpush.msra.mxu0 0.0
        %357 = vmatpush.msra.mxu0 0.0
        %358 = vmatpush.msra.mxu0 0.0
        %359 = vmatpush.msra.mxu0 0.0
        %360 = vmatpush.msra.mxu0 0.0
        %361 = vmatpush.msra.mxu0 0.0
        %362 = vmatpush.msra.mxu0 0.0
        %363 = vmatpush.msra.mxu0 0.0
        %364 = vmatpush.msra.mxu0 0.0
        %365 = vmatpush.msra.mxu0 0.0
        %366 = vmatpush.msra.mxu0 0.0
        %367 = vmatpush.msra.mxu0 0.0
        %368 = vmatpush.msra.mxu0 0.0
        %369 = vmatpush.msra.mxu0 %v337
        %370 = vmatpush.msra.mxu0 %v336
        %371 = vmatmul.f32.gmra.mxu0 %v344
        %v372 = vpop.f32.mrf.mxu0
        %v373 = vadd.f32 %v340, %v372
        %374 = vmatmul.f32.gmra.mxu0 %v347
        %v375 = vpop.f32.mrf.mxu0
        %v376 = vadd.f32 %v340, %v375
        %377 = vmatmul.f32.gmra.mxu0 %v350
        %v378 = vpop.f32.mrf.mxu0
        %v379 = vadd.f32 %v340, %v378
        %380 = vmatmul.f32.gmra.mxu0 %v353
        %v381 = vpop.f32.mrf.mxu0
        %v382 = vadd.f32 %v340, %v381
        %383 = vdwg.mxu0
        %v384 = vmax.f32 %v373, 0.0
        %v385 = vmax.f32 %v376, 0.0
        %v386 = vmax.f32 %v379, 0.0
        %v387 = vmax.f32 %v382, 0.0
        %v388 = vld [vmem:[%s4] sm:$0xff]
        %v389 = vld [vmem:[%s4 + $0x8] sm:$0xff]
        %v390 = vld [vmem:[%s4 + $0x10] sm:$0xff]
        %v391 = vld [vmem:[%s4 + $0x18] sm:$0xff]
        %v392 = vld [vmem:[%s4 + $0x20] sm:$0xff]
        %v393 = vld [vmem:[%s4 + $0x28] sm:$0xff]
        %v394 = vld [vmem:[%s4 + $0x30] sm:$0xff]
        %v395 = vld [vmem:[%s4 + $0x38] sm:$0xff]
        %v396 = vld [vmem:[%s4 + $0x40] sm:$0xff]
        %v397 = vld [vmem:[%s4 + $0x48] sm:$0xff]
        %v398 = vld [vmem:[%s4 + $0x50] sm:$0xff]
        %v399 = vld [vmem:[%s4 + $0x58] sm:$0xff]
        %v400 = vld [vmem:[%s4 + $0x60] sm:$0xff]
        %v401 = vld [vmem:[%s4 + $0x68] sm:$0xff]
        %v402 = vld [vmem:[%s4 + $0x70] sm:$0xff]
        %v403 = vld [vmem:[%s4 + $0x78] sm:$0xff]
        %404 = vmatpush.msra.mxu0 %v403
        %405 = vmatpush.msra.mxu0 %v402
        %406 = vmatpush.msra.mxu0 %v401
        %407 = vmatpush.msra.mxu0 %v400
        %408 = vmatpush.msra.mxu0 %v399
        %409 = vmatpush.msra.mxu0 %v398
        %410 = vmatpush.msra.mxu0 %v397
        %411 = vmatpush.msra.mxu0 %v396
        %412 = vmatpush.msra.mxu0 %v395
        %413 = vmatpush.msra.mxu0 %v394
        %414 = vmatpush.msra.mxu0 %v393
        %415 = vmatpush.msra.mxu0 %v392
        %416 = vmatpush.msra.mxu0 %v391
        %417 = vmatpush.msra.mxu0 %v390
        %418 = vmatpush.msra.mxu0 %v389
        %419 = vmatpush.msra.mxu0 %v388
        %420 = vmatmul.f32.gmra.mxu0 %v384
        %v421 = vpop.f32.mrf.mxu0
        %v422 = vadd.f32 0.0, %v421
        %423 = vmatmul.f32.gmra.mxu0 %v385
        %v424 = vpop.f32.mrf.mxu0
        %v425 = vadd.f32 0.0, %v424
        %426 = vmatmul.f32.gmra.mxu0 %v386
        %v427 = vpop.f32.mrf.mxu0
        %v428 = vadd.f32 0.0, %v427
        %429 = vmatmul.f32.gmra.mxu0 %v387
        %v430 = vpop.f32.mrf.mxu0
        %v431 = vadd.f32 0.0, %v430
        %432 = vdwg.mxu0
        %s433 = scalar_lea.vmem [#allocation2], %s272
        %434 = vst [vmem:[%s433] sm:$0xff] %v422
        %435 = vst [vmem:[%s433 + $0x8] sm:$0xff] %v425
        %436 = vst [vmem:[%s433 + $0x10] sm:$0xff] %v428
        %437 = vst [vmem:[%s433 + $0x18] sm:$0xff] %v431
      $region48: #{gin_forward.1} parent=43 // pred_fallthru
        _
      %p438 = scmp.eq.s32.totalorder %s21, 1
      // Predicated region
      $region49: #{gin_forward.1} parent=43 // pred_check
        %p439 = pneg %p438
      $region50: #{gin_forward.1} parent=43 // pred_check_branch
        %441 = sbr.rel (%p439) target = $region52
      $region51: #{gin_forward.1} parent=43 // pred_region
        %v442 = vld [vmem:[#allocation2] sm:$0xff]
        %v443 = vld [vmem:[#allocation2 + $0x8] sm:$0xff]
        %v444 = vld [vmem:[#allocation2 + $0x10] sm:$0xff]
        %v445 = vld [vmem:[#allocation2 + $0x18] sm:$0xff]
        %s446 = scalar_lea.vmem [#allocation2], %s272
        %v447 = vld [vmem:[%s446] sm:$0xff]
        %v448 = vld [vmem:[%s446 + $0x8] sm:$0xff]
        %v449 = vld [vmem:[%s446 + $0x10] sm:$0xff]
        %v450 = vld [vmem:[%s446 + $0x18] sm:$0xff]
        %vm451 = vcmask 261120
        %v453 = vsel %vm451, %v277, 0
        %v456 = vsel %vm451, %v278, 0
        %v459 = vsel %vm451, %v279, 0
        %v462 = vsel %vm451, %v280, 0
        %464 = vmatpush.msra.mxu0 0.0
        %465 = vmatpush.msra.mxu0 0.0
        %466 = vmatpush.msra.mxu0 0.0
        %467 = vmatpush.msra.mxu0 0.0
        %468 = vmatpush.msra.mxu0 0.0
        %469 = vmatpush.msra.mxu0 0.0
        %470 = vmatpush.msra.mxu0 0.0
        %471 = vmatpush.msra.mxu0 0.0
        %472 = vmatpush.msra.mxu0 0.0
        %473 = vmatpush.msra.mxu0 0.0
        %474 = vmatpush.msra.mxu0 0.0
        %475 = vmatpush.msra.mxu0 0.0
        %476 = vmatpush.msra.mxu0 %v445
        %477 = vmatpush.msra.mxu0 %v444
        %478 = vmatpush.msra.mxu0 %v443
        %479 = vmatpush.msra.mxu0 %v442
        %480 = vmatmul.f32.gmra.mxu0 %v453
        %v481 = vpop.f32.mrf.mxu0
        %v482 = vadd.f32 %v447, %v481
        %483 = vmatmul.f32.gmra.mxu0 %v456
        %v484 = vpop.f32.mrf.mxu0
        %v485 = vadd.f32 %v448, %v484
        %486 = vmatmul.f32.gmra.mxu0 %v459
        %v487 = vpop.f32.mrf.mxu0
        %v488 = vadd.f32 %v449, %v487
        %489 = vmatmul.f32.gmra.mxu0 %v462
        %v490 = vpop.f32.mrf.mxu0
        %v491 = vadd.f32 %v450, %v490
        %492 = vdwg.mxu0
        %v493 = vld [vmem:[%s5] sm:$0x1]
        %v495 = vperm.slane %v493, 0
        %v497 = vadd.f32 %v482, %v495
        %v498 = vadd.f32 %v485, %v495
        %v499 = vadd.f32 %v488, %v495
        %v500 = vadd.f32 %v491, %v495
        %v501 = vlaneseq
        %v502 = vand.u32 %v501, 127
        %vm503 = vcmp.lt.s32.totalorder %v502, 8
        %v504 = vsel %vm503, %v497, -1e+30
        %v505 = vsel %vm503, %v498, -1e+30
        %v506 = vsel %vm503, %v499, -1e+30
        %v507 = vsel %vm503, %v500, -1e+30
        %508 = vmax.xlane.f32.xlu0 %v504
        %v509 = vpop.xlane.xlu0 %508
        %510 = vmax.xlane.f32.xlu0 %v505
        %v511 = vpop.xlane.xlu0 %510
        %512 = vmax.xlane.f32.xlu0 %v506
        %v513 = vpop.xlane.xlu0 %512
        %514 = vmax.xlane.f32.xlu0 %v507
        %v515 = vpop.xlane.xlu0 %514
        %v516 = vsub.f32 %v504, %v509
        %v517 = vsub.f32 %v505, %v511
        %v518 = vsub.f32 %v506, %v513
        %v519 = vsub.f32 %v507, %v515
        %v520 = vmul.f32 %v516, 1.442695
        %v521 = vpow.pop %v520
        %v522 = vmul.f32 %v517, 1.442695
        %v523 = vpow.pop %v522
        %v524 = vmul.f32 %v518, 1.442695
        %v525 = vpow.pop %v524
        %v526 = vmul.f32 %v519, 1.442695
        %v527 = vpow.pop %v526
        %528 = vadd.xlane.f32.xlu0 %v521
        %v529 = vpop.xlane.xlu0 %528
        %530 = vadd.xlane.f32.xlu0 %v523
        %v531 = vpop.xlane.xlu0 %530
        %532 = vadd.xlane.f32.xlu0 %v525
        %v533 = vpop.xlane.xlu0 %532
        %534 = vadd.xlane.f32.xlu0 %v527
        %v535 = vpop.xlane.xlu0 %534
        %v536 = vlog2.pop %v529
        %v537 = vmul.f32 %v536, 0.6931472
        %v538 = vlog2.pop %v531
        %v539 = vmul.f32 %v538, 0.6931472
        %v540 = vlog2.pop %v533
        %v541 = vmul.f32 %v540, 0.6931472
        %v542 = vlog2.pop %v535
        %v543 = vmul.f32 %v542, 0.6931472
        %v544 = vsub.f32 %v516, %v537
        %v545 = vsub.f32 %v517, %v539
        %v546 = vsub.f32 %v518, %v541
        %v547 = vsub.f32 %v519, %v543
        %548 = vst [vmem:[%s269] sm:$0xff] %v544
        %549 = vst [vmem:[%s269 + $0x8] sm:$0xff] %v545
        %550 = vst [vmem:[%s269 + $0x10] sm:$0xff] %v546
        %551 = vst [vmem:[%s269 + $0x18] sm:$0xff] %v547
      $region52: #{gin_forward.1} parent=43 // pred_fallthru
        _
      %s552 = smul.u32 %s22, %s21
      %s553 = smul.u32 4, %s552
      %p554 = scmp.lt.s32.totalorder %s553, 3
      %s555 = scalar_select %p554, %s553, 3
      %s556 = smul.addr %s555, 8
      %s557 = scalar_lea.vmem %s6, %s556
      // Predicated region
      $region53: #{gin_forward.1} parent=43 // pred_check
        %p558 = pneg %p180
      $region54: #{gin_forward.1} parent=43 // pred_check_branch
        %560 = sbr.rel (%p558) target = $region56
      $region55: #{gin_forward.1} parent=43 // pred_region
        %s561 = smul.u32 %s22, %s21
        %s562 = smul.u32 4, %s561
      $region56: #{gin_forward.1} parent=43 // pred_fallthru
        _
    $region44: #{gin_forward.1} parent=5 // pred_fallthru
      _
    %p563 = scmp.le.s32.totalorder 2, %s12
    // Predicated region
    $region57: #{gin_forward.1} parent=5 // pred_check
      %p564 = pneg %p563
    $region58: #{gin_forward.1} parent=5 // pred_check_branch
      %566 = sbr.rel (%p564) target = $region60
    $region59: #{gin_forward.1} parent=5 // pred_region
      %s567 = ssub.s32 %s12, 2
      // Predicated region
      $region61: #{gin_forward.1} parent=59 // pred_check
        %p568 = pneg %p186
      $region62: #{gin_forward.1} parent=59 // pred_check_branch
        %570 = sbr.rel (%p568) target = $region64
      $region63: #{gin_forward.1} parent=59 // pred_region
        %s571 = smul.u32 %s24, %s23
        %s572 = smul.u32 4, %s571
        %p573 = scmp.lt.s32.totalorder %s572, 3
        %s574 = scalar_select %p573, %s572, 3
        %s575 = smul.addr %s574, 8
        %s576 = scalar_lea.vmem %s6, %s575
      $region64: #{gin_forward.1} parent=59 // pred_fallthru
        _
    $region60: #{gin_forward.1} parent=5 // pred_fallthru
      _
  $region6: #{gin_forward.1} parent=0 // loop_footer
    %s16 = sadd.s32 1, %s12
  $region7: #{gin_forward.1} parent=0 // loop_footer_branch
    %11 = sbr.rel target = $region3
  $region8: #{gin_forward.1} parent=0 // loop_exit
    _

</llo_original>
